<compile_context>
chip_gen: v7x
topology: tpu7x:2x2x1
jax: 0.10.0
libtpu: 0.0.40
codegen_flags: <defaults>
</compile_context>

<pallas_src>
import functools

import jax
import jax.numpy as jnp
import numpy as np
from jax import lax
from jax.experimental import pallas as pl
from jax.experimental.pallas import tpu as pltpu

_LANES = 128
_MAX_ROWS_PER_STEP = 512          # 512 rows x 128 lanes = 64K pixels per step


def _impute_loss_kernel(logits_ref, tgt_ref, pred_ref, mask_ref, unc_ref,
                        out_ref, acc_ref, *, num_classes, acc_rows,
                        rows_per_split, needs_mask):
    t = pl.program_id(2)

    @pl.when(t == 0)
    def _():
        acc_ref[...] = jnp.zeros_like(acc_ref)

    tgt = tgt_ref[...].astype(jnp.int32)        # (rt, 128)
    pred = pred_ref[...].astype(jnp.int32)      # (rt, 128)
    mask = mask_ref[...].astype(jnp.int32)      # (rt, 128)
    unc = unc_ref[...].astype(jnp.float32)      # (rt, 128)

    # target[mask == 0] = prediction[mask == 0]
    tgt_imp = jnp.where(mask == 0, pred, tgt)   # (rt, 128)

    # Cross entropy over the (small, static) class axis, fully unrolled so all
    # per-pixel work stays dense (rt, 128) VPU/EUP ops — no (C, rt, 128) iota
    # temporary and no cross-lane/XLU reductions in the hot loop.
    logit_c = [logits_ref[c].astype(jnp.float32) for c in range(num_classes)]
    mx = logit_c[0]
    for c in range(1, num_classes):
        mx = jnp.maximum(mx, logit_c[c])
    se = jnp.exp(logit_c[0] - mx)
    picked = jnp.where(tgt_imp == 0, logit_c[0], 0.0)
    for c in range(1, num_classes):
        se = se + jnp.exp(logit_c[c] - mx)
        picked = picked + jnp.where(tgt_imp == c, logit_c[c], 0.0)
    ce = jnp.log(se) + mx - picked              # (rt, 128)

    # uncertainty[mask == 1] = 0 ; weight = exp(-uncertainty)
    weight = jnp.exp(-jnp.where(mask == 1, 0.0, unc))
    wl = ce * weight                            # (rt, 128)

    if needs_mask:
        rt = wl.shape[0]
        row_ids = lax.broadcasted_iota(jnp.int32, wl.shape, 0) + t * rt
        wl = jnp.where(row_ids < rows_per_split, wl, 0.0)

    # Dense, fixed-size accumulator: fold the slab to (acc_rows, 128) with a
    # layout-preserving reshape + leading-dim sum (pure vreg adds, no XLU).
    if wl.shape[0] == acc_rows:
        acc_ref[...] += wl
    else:
        acc_ref[...] += jnp.sum(wl.reshape(-1, acc_rows, _LANES), axis=0)

    @pl.when(t == pl.num_programs(2) - 1)
    def _():
        out_ref[...] = acc_ref[...].reshape(1, 1, acc_rows, _LANES)


def _pick_row_tile(rows, num_classes, logits_itemsize, aux_itemsize_sum,
                   window_budget_bytes):
    """Rows (of 128 px) per grid step: big, multiple of 8, VMEM-budgeted."""
    if rows <= 8:
        return rows
    # Double-buffered input windows + in-kernel f32 temporaries, per row.
    bytes_per_row = (2 * _LANES * (num_classes * logits_itemsize
                                   + aux_itemsize_sum)
                     + _LANES * 4 * (12 + num_classes))
    budget_rows = max(8, window_budget_bytes // bytes_per_row)
    rt = min(rows, _MAX_ROWS_PER_STEP, budget_rows)
    rt = max(8, (rt // 8) * 8)
    if rows % rt != 0:
        # Prefer a nearby exact divisor (avoids the masked partial last tile),
        # but never collapse below rt // 2 — masking is cheap.
        for cand in range(rt, max(8, rt // 2) - 1, -8):
            if rows % cand == 0:
                return cand
    return rt


def partial_annotation_impute_loss(single_output, uncertainty, prediction,
                                   target, mask):
    """single_output: (N, C, H, W) logits (f32 or bf16);
    uncertainty: (N, H, W) float; prediction/target/mask: (N, H, W) integer."""
    N, C, H, W = single_output.shape
    assert prediction.shape == target.shape
    HW = H * W
    assert HW % _LANES == 0, "H*W must be a multiple of 128"
    R = HW // _LANES                       # rows of 128 pixels per image
    P = N * HW

    # v7x has 2 TensorCores: if the batch axis alone cannot feed both cores,
    # split the rows of the single image into 2 parallel chunks.
    S = 2 if (N == 1 and R % 2 == 0 and R >= 2) else 1
    rows_per_split = R // S

    # Per-generation VMEM budgets (v7x: 64 MiB physical / 32 MiB scoped;
    # v5e / v6e: 128 MiB physical).
    try:
        vmem_cap = int(pltpu.get_tpu_info().vmem_capacity_bytes)
    except Exception:
        vmem_cap = 64 * 1024 * 1024
    window_budget = min(16 * 1024 * 1024, vmem_cap // 4)
    vmem_limit = int(min(vmem_cap // 2, 64 * 1024 * 1024))

    aux_bytes = (jnp.dtype(target.dtype).itemsize
                 + jnp.dtype(prediction.dtype).itemsize
                 + jnp.dtype(mask.dtype).itemsize
                 + jnp.dtype(uncertainty.dtype).itemsize)
    logits_itemsize = jnp.dtype(single_output.dtype).itemsize

    rt = _pick_row_tile(rows_per_split, C, logits_itemsize, aux_bytes,
                        window_budget)
    acc_rows = 8 if rt % 8 == 0 else rt
    T = pl.cdiv(rows_per_split, rt)
    needs_mask = (rows_per_split % rt) != 0

    # Contiguous reshapes only — no transpose, no extra HBM pass, and no
    # wrapper-side dtype casts (kernel widens in-register).
    logits = single_output.reshape(N, C, S, rows_per_split, _LANES)
    tgt = target.reshape(N, S, rows_per_split, _LANES)
    pred = prediction.reshape(N, S, rows_per_split, _LANES)
    msk = mask.reshape(N, S, rows_per_split, _LANES)
    unc = uncertainty.reshape(N, S, rows_per_split, _LANES)

    kernel = functools.partial(
        _impute_loss_kernel, num_classes=C, acc_rows=acc_rows,
        rows_per_split=rows_per_split, needs_mask=needs_mask)

    aux_spec = pl.BlockSpec((pl.Squeezed(), pl.Squeezed(), rt, _LANES),
                            lambda n, s, t: (n, s, t, 0))

    partial_sums = pl.pallas_call(
        kernel,
        out_shape=jax.ShapeDtypeStruct((N, S, acc_rows, _LANES), jnp.float32),
        grid_spec=pltpu.PrefetchScalarGridSpec(
            num_scalar_prefetch=0,
            grid=(N, S, T),
            in_specs=[
                pl.BlockSpec((pl.Squeezed(), C, pl.Squeezed(), rt, _LANES),
                             lambda n, s, t: (n, 0, s, t, 0)),
                aux_spec, aux_spec, aux_spec, aux_spec,
            ],
            out_specs=pl.BlockSpec((1, 1, acc_rows, _LANES),
                                   lambda n, s, t: (n, s, 0, 0)),
            scratch_shapes=[pltpu.VMEM((acc_rows, _LANES), jnp.float32)],
        ),
        compiler_params=pltpu.CompilerParams(
            dimension_semantics=("parallel", "parallel", "arbitrary"),
            vmem_limit_bytes=vmem_limit),
    )(logits, tgt, pred, msk, unc)

    # Per-(image, split) lane-dense partial sums; one XLA reduce + mean.
    return (jnp.sum(partial_sums) / P).astype(jnp.float32)


def _reference_loss(single_output, uncertainty, prediction, target, mask):
    """Pure-JAX reference replicating the PyTorch forward."""
    tgt = jnp.where(mask == 0, prediction, target).astype(jnp.int32)
    logits = single_output.astype(jnp.float32)
    logp = jax.nn.log_softmax(logits, axis=1)
    picked = jnp.take_along_axis(logp, tgt[:, None, :, :], axis=1)[:, 0]
    seg_loss = -picked
    unc = jnp.where(mask == 1, 0.0, uncertainty.astype(jnp.float32))
    return jnp.mean(seg_loss * jnp.exp(-unc))


if __name__ == "__main__":
    key = jax.random.PRNGKey(0)
    k1, k2, k3, k4, k5 = jax.random.split(key, 5)

    N, C, H, W = 2, 4, 16, 16
    single_output = jax.random.normal(k1, (N, C, H, W), dtype=jnp.float32)
    uncertainty = jax.random.uniform(k2, (N, H, W), dtype=jnp.float32)
    # "Producer-side" integer streams (int8 keeps HBM traffic low; the wrapper
    # itself performs no dtype casts).
    prediction = jax.random.randint(k3, (N, H, W), 0, C,
                                    dtype=jnp.int32).astype(jnp.int8)
    target = jax.random.randint(k4, (N, H, W), 0, C,
                                dtype=jnp.int32).astype(jnp.int8)
    mask = jax.random.bernoulli(k5, 0.7, (N, H, W)).astype(jnp.int8)

    loss = partial_annotation_impute_loss(
        single_output, uncertainty, prediction, target, mask)
    loss = jax.block_until_ready(loss)

    ref = _reference_loss(single_output, uncertainty, prediction, target, mask)
    np.testing.assert_allclose(np.asarray(loss), np.asarray(ref),
                               rtol=1e-5, atol=1e-5)

    print("KERNEL_OK")
</pallas_src>

<mosaic_0001>
module attributes {stable_mosaic.version = 11 : i64} {
  func.func @_impute_loss_kernel(%arg0: i32, %arg1: i32, %arg2: i32, %arg3: memref<1x4x1x2x128xf32, #tpu.memory_space<vmem>>, %arg4: memref<1x1x2x128xi8, #tpu.memory_space<vmem>>, %arg5: memref<1x1x2x128xi8, #tpu.memory_space<vmem>>, %arg6: memref<1x1x2x128xi8, #tpu.memory_space<vmem>>, %arg7: memref<1x1x2x128xf32, #tpu.memory_space<vmem>>, %arg8: memref<1x1x2x128xf32, #tpu.memory_space<vmem>>, %arg9: memref<2x128xf32, #tpu.memory_space<vmem>>) attributes {dimension_semantics = [#tpu.dimension_semantics<parallel>, #tpu.dimension_semantics<parallel>, #tpu.dimension_semantics<arbitrary>], iteration_bounds = array<i64: 2, 1, 1>, scalar_prefetch = 0 : i64, scratch_operands = 1 : i64, tpu.core_type = #tpu.core_type<tc>, window_params = [{transform_indices = @transform_0, window_bounds = array<i64: 1, 4, 1, 2, 128>}, {transform_indices = @transform_1, window_bounds = array<i64: 1, 1, 2, 128>}, {transform_indices = @transform_2, window_bounds = array<i64: 1, 1, 2, 128>}, {transform_indices = @transform_3, window_bounds = array<i64: 1, 1, 2, 128>}, {transform_indices = @transform_4, window_bounds = array<i64: 1, 1, 2, 128>}, {transform_indices = @transform_5, window_bounds = array<i64: 1, 1, 2, 128>}]} {
    %c0_i32 = arith.constant 0 : i32
    %0 = arith.cmpi eq, %arg2, %c0_i32 : i32
    %1 = arith.extui %0 : i1 to i32
    %c0_i32_0 = arith.constant 0 : i32
    %2 = arith.cmpi ne, %1, %c0_i32_0 : i32
    scf.if %2 {
      %cst_47 = arith.constant 0.000000e+00 : f32
      %75 = vector.broadcast %cst_47 : f32 to vector<2x128xf32>
      %c0_48 = arith.constant 0 : index
      %c0_49 = arith.constant 0 : index
      %76 = vector.load %arg9[%c0_48, %c0_49] : memref<2x128xf32, #tpu.memory_space<vmem>>, vector<2x128xf32>
      tpu.vector_store %arg9[%c0_48, %c0_49], %75 {strides = array<i32>} : memref<2x128xf32, #tpu.memory_space<vmem>>, vector<2x128xf32>,
    } else {
    }
    %c0 = arith.constant 0 : index
    %c0_1 = arith.constant 0 : index
    %c0_2 = arith.constant 0 : index
    %c0_3 = arith.constant 0 : index
    %3 = vector.load %arg4[%c0, %c0_1, %c0_2, %c0_3] : memref<1x1x2x128xi8, #tpu.memory_space<vmem>>, vector<1x1x2x128xi8>
    %4 = vector.shape_cast %3 : vector<1x1x2x128xi8> to vector<2x128xi8>
    %5 = arith.extsi %4 : vector<2x128xi8> to vector<2x128xi32>
    %c0_4 = arith.constant 0 : index
    %c0_5 = arith.constant 0 : index
    %c0_6 = arith.constant 0 : index
    %c0_7 = arith.constant 0 : index
    %6 = vector.load %arg5[%c0_4, %c0_5, %c0_6, %c0_7] : memref<1x1x2x128xi8, #tpu.memory_space<vmem>>, vector<1x1x2x128xi8>
    %7 = vector.shape_cast %6 : vector<1x1x2x128xi8> to vector<2x128xi8>
    %8 = arith.extsi %7 : vector<2x128xi8> to vector<2x128xi32>
    %c0_8 = arith.constant 0 : index
    %c0_9 = arith.constant 0 : index
    %c0_10 = arith.constant 0 : index
    %c0_11 = arith.constant 0 : index
    %9 = vector.load %arg6[%c0_8, %c0_9, %c0_10, %c0_11] : memref<1x1x2x128xi8, #tpu.memory_space<vmem>>, vector<1x1x2x128xi8>
    %10 = vector.shape_cast %9 : vector<1x1x2x128xi8> to vector<2x128xi8>
    %11 = arith.extsi %10 : vector<2x128xi8> to vector<2x128xi32>
    %c0_12 = arith.constant 0 : index
    %c0_13 = arith.constant 0 : index
    %c0_14 = arith.constant 0 : index
    %c0_15 = arith.constant 0 : index
    %12 = vector.load %arg7[%c0_12, %c0_13, %c0_14, %c0_15] : memref<1x1x2x128xf32, #tpu.memory_space<vmem>>, vector<1x1x2x128xf32>
    %13 = vector.shape_cast %12 : vector<1x1x2x128xf32> to vector<2x128xf32>
    %c0_i32_16 = arith.constant 0 : i32
    %14 = vector.broadcast %c0_i32_16 : i32 to vector<2x128xi32>
    %15 = arith.cmpi eq, %11, %14 : vector<2x128xi32>
    %16 = arith.select %15, %8, %5 : vector<2x128xi1>, vector<2x128xi32>
    %c0_17 = arith.constant 0 : index
    %c0_18 = arith.constant 0 : index
    %c0_19 = arith.constant 0 : index
    %c0_20 = arith.constant 0 : index
    %c0_21 = arith.constant 0 : index
    %17 = vector.load %arg3[%c0_17, %c0_18, %c0_19, %c0_20, %c0_21] : memref<1x4x1x2x128xf32, #tpu.memory_space<vmem>>, vector<1x1x1x2x128xf32>
    %18 = vector.shape_cast %17 : vector<1x1x1x2x128xf32> to vector<2x128xf32>
    %c0_22 = arith.constant 0 : index
    %c1 = arith.constant 1 : index
    %c0_23 = arith.constant 0 : index
    %c0_24 = arith.constant 0 : index
    %c0_25 = arith.constant 0 : index
    %19 = vector.load %arg3[%c0_22, %c1, %c0_23, %c0_24, %c0_25] : memref<1x4x1x2x128xf32, #tpu.memory_space<vmem>>, vector<1x1x1x2x128xf32>
    %20 = vector.shape_cast %19 : vector<1x1x1x2x128xf32> to vector<2x128xf32>
    %c0_26 = arith.constant 0 : index
    %c2 = arith.constant 2 : index
    %c0_27 = arith.constant 0 : index
    %c0_28 = arith.constant 0 : index
    %c0_29 = arith.constant 0 : index
    %21 = vector.load %arg3[%c0_26, %c2, %c0_27, %c0_28, %c0_29] : memref<1x4x1x2x128xf32, #tpu.memory_space<vmem>>, vector<1x1x1x2x128xf32>
    %22 = vector.shape_cast %21 : vector<1x1x1x2x128xf32> to vector<2x128xf32>
    %c0_30 = arith.constant 0 : index
    %c3 = arith.constant 3 : index
    %c0_31 = arith.constant 0 : index
    %c0_32 = arith.constant 0 : index
    %c0_33 = arith.constant 0 : index
    %23 = vector.load %arg3[%c0_30, %c3, %c0_31, %c0_32, %c0_33] : memref<1x4x1x2x128xf32, #tpu.memory_space<vmem>>, vector<1x1x1x2x128xf32>
    %24 = vector.shape_cast %23 : vector<1x1x1x2x128xf32> to vector<2x128xf32>
    %25 = arith.maximumf %18, %20 : vector<2x128xf32>
    %26 = arith.maximumf %25, %22 : vector<2x128xf32>
    %27 = arith.maximumf %26, %24 : vector<2x128xf32>
    %28 = arith.subf %18, %27 : vector<2x128xf32>
    %29 = math.exp %28 : vector<2x128xf32>
    %c0_i32_34 = arith.constant 0 : i32
    %30 = vector.broadcast %c0_i32_34 : i32 to vector<2x128xi32>
    %31 = arith.cmpi eq, %16, %30 : vector<2x128xi32>
    %cst = arith.constant 0.000000e+00 : f32
    %32 = vector.broadcast %cst : f32 to vector<2x128xf32>
    %33 = arith.select %31, %18, %32 : vector<2x128xi1>, vector<2x128xf32>
    %34 = arith.subf %20, %27 : vector<2x128xf32>
    %35 = math.exp %34 : vector<2x128xf32>
    %36 = arith.addf %29, %35 : vector<2x128xf32>
    %c1_i32 = arith.constant 1 : i32
    %37 = vector.broadcast %c1_i32 : i32 to vector<2x128xi32>
    %38 = arith.cmpi eq, %16, %37 : vector<2x128xi32>
    %cst_35 = arith.constant 0.000000e+00 : f32
    %39 = vector.broadcast %cst_35 : f32 to vector<2x128xf32>
    %40 = arith.select %38, %20, %39 : vector<2x128xi1>, vector<2x128xf32>
    %41 = arith.addf %33, %40 : vector<2x128xf32>
    %42 = arith.subf %22, %27 : vector<2x128xf32>
    %43 = math.exp %42 : vector<2x128xf32>
    %44 = arith.addf %36, %43 : vector<2x128xf32>
    %c2_i32 = arith.constant 2 : i32
    %45 = vector.broadcast %c2_i32 : i32 to vector<2x128xi32>
    %46 = arith.cmpi eq, %16, %45 : vector<2x128xi32>
    %cst_36 = arith.constant 0.000000e+00 : f32
    %47 = vector.broadcast %cst_36 : f32 to vector<2x128xf32>
    %48 = arith.select %46, %22, %47 : vector<2x128xi1>, vector<2x128xf32>
    %49 = arith.addf %41, %48 : vector<2x128xf32>
    %50 = arith.subf %24, %27 : vector<2x128xf32>
    %51 = math.exp %50 : vector<2x128xf32>
    %52 = arith.addf %44, %51 : vector<2x128xf32>
    %c3_i32 = arith.constant 3 : i32
    %53 = vector.broadcast %c3_i32 : i32 to vector<2x128xi32>
    %54 = arith.cmpi eq, %16, %53 : vector<2x128xi32>
    %cst_37 = arith.constant 0.000000e+00 : f32
    %55 = vector.broadcast %cst_37 : f32 to vector<2x128xf32>
    %56 = arith.select %54, %24, %55 : vector<2x128xi1>, vector<2x128xf32>
    %57 = arith.addf %49, %56 : vector<2x128xf32>
    %58 = math.log %52 : vector<2x128xf32>
    %59 = arith.addf %58, %27 : vector<2x128xf32>
    %60 = arith.subf %59, %57 : vector<2x128xf32>
    %c1_i32_38 = arith.constant 1 : i32
    %61 = vector.broadcast %c1_i32_38 : i32 to vector<2x128xi32>
    %62 = arith.cmpi eq, %11, %61 : vector<2x128xi32>
    %cst_39 = arith.constant 0.000000e+00 : f32
    %63 = vector.broadcast %cst_39 : f32 to vector<2x128xf32>
    %64 = arith.select %62, %63, %13 : vector<2x128xi1>, vector<2x128xf32>
    %cst_40 = arith.constant 0.000000e+00 : f32
    %65 = vector.broadcast %cst_40 : f32 to vector<2x128xf32>
    %66 = arith.subf %65, %64 : vector<2x128xf32>
    %67 = math.exp %66 : vector<2x128xf32>
    %68 = arith.mulf %60, %67 : vector<2x128xf32>
    %c0_41 = arith.constant 0 : index
    %c0_42 = arith.constant 0 : index
    %69 = vector.load %arg9[%c0_41, %c0_42] : memref<2x128xf32, #tpu.memory_space<vmem>>, vector<2x128xf32>
    %70 = arith.addf %69, %68 : vector<2x128xf32>
    %c0_43 = arith.constant 0 : index
    %c0_44 = arith.constant 0 : index
    %71 = vector.load %arg9[%c0_43, %c0_44] : memref<2x128xf32, #tpu.memory_space<vmem>>, vector<2x128xf32>
    tpu.vector_store %arg9[%c0_43, %c0_44], %70 {strides = array<i32>} : memref<2x128xf32, #tpu.memory_space<vmem>>, vector<2x128xf32>,
    %c0_i32_45 = arith.constant 0 : i32
    %72 = arith.cmpi eq, %arg2, %c0_i32_45 : i32
    %73 = arith.extui %72 : i1 to i32
    %c0_i32_46 = arith.constant 0 : i32
    %74 = arith.cmpi ne, %73, %c0_i32_46 : i32
    scf.if %74 {
      %c0_47 = arith.constant 0 : index
      %c0_48 = arith.constant 0 : index
      %75 = vector.load %arg9[%c0_47, %c0_48] : memref<2x128xf32, #tpu.memory_space<vmem>>, vector<2x128xf32>
      %76 = vector.shape_cast %75 : vector<2x128xf32> to vector<1x1x2x128xf32>
      %c0_49 = arith.constant 0 : index
      %c0_50 = arith.constant 0 : index
      %c0_51 = arith.constant 0 : index
      %c0_52 = arith.constant 0 : index
      %77 = vector.load %arg8[%c0_49, %c0_50, %c0_51, %c0_52] : memref<1x1x2x128xf32, #tpu.memory_space<vmem>>, vector<1x1x2x128xf32>
      tpu.vector_store %arg8[%c0_49, %c0_50, %c0_51, %c0_52], %76 {strides = array<i32>} : memref<1x1x2x128xf32, #tpu.memory_space<vmem>>, vector<1x1x2x128xf32>,
    } else {
    }
    return
  }
  func.func @transform_0(%arg0: i32, %arg1: i32, %arg2: i32) -> (i32, i32, i32, i32, i32) {
    %c0_i32 = arith.constant 0 : i32
    %c0_i32_0 = arith.constant 0 : i32
    %c0_i32_1 = arith.constant 0 : i32
    return %arg0, %c0_i32, %arg1, %arg2, %c0_i32_0 : i32, i32, i32, i32, i32
  }
  func.func @transform_1(%arg0: i32, %arg1: i32, %arg2: i32) -> (i32, i32, i32, i32) {
    %c0_i32 = arith.constant 0 : i32
    %c0_i32_0 = arith.constant 0 : i32
    return %arg0, %arg1, %arg2, %c0_i32 : i32, i32, i32, i32
  }
  func.func @transform_2(%arg0: i32, %arg1: i32, %arg2: i32) -> (i32, i32, i32, i32) {
    %c0_i32 = arith.constant 0 : i32
    %c0_i32_0 = arith.constant 0 : i32
    return %arg0, %arg1, %arg2, %c0_i32 : i32, i32, i32, i32
  }
  func.func @transform_3(%arg0: i32, %arg1: i32, %arg2: i32) -> (i32, i32, i32, i32) {
    %c0_i32 = arith.constant 0 : i32
    %c0_i32_0 = arith.constant 0 : i32
    return %arg0, %arg1, %arg2, %c0_i32 : i32, i32, i32, i32
  }
  func.func @transform_4(%arg0: i32, %arg1: i32, %arg2: i32) -> (i32, i32, i32, i32) {
    %c0_i32 = arith.constant 0 : i32
    %c0_i32_0 = arith.constant 0 : i32
    return %arg0, %arg1, %arg2, %c0_i32 : i32, i32, i32, i32
  }
  func.func @transform_5(%arg0: i32, %arg1: i32, %arg2: i32) -> (i32, i32, i32, i32) {
    %c0_i32 = arith.constant 0 : i32
    %c0_i32_0 = arith.constant 0 : i32
    %c0_i32_1 = arith.constant 0 : i32
    return %arg0, %arg1, %c0_i32, %c0_i32_0 : i32, i32, i32, i32
  }
}

</mosaic_0001>

<llo_original>
// kernel: tpu_custom_call.1
$region0: #{tpu_custom_call.1}
  #allocation0 [shape = 'u32[]', space=smem, size = 0x4, offset = 0x4, fixed_abs, tag = 'smem constant byte address 0x4 - core index']
  #allocation1 [shape = 'u32[144,128]{1,0:T(1,128)}', space=vmem, size = 0x12000, scoped, tag = 'internal scratch']
  #allocation2 [shape = 'f32[2,128]{1,0:T(2,128)}', space=vmem, size = 0x400, scoped, tag = 'scratch operand']
  %s0 = inlined_call_operand.hbm [shape: f32[2,4,1,2,128], index: 0, kind: input, shape index: {}]
  %s1 = inlined_call_operand.vmem [shape: s8[2,1,2,128], index: 1, kind: input, shape index: {}]
  %s2 = inlined_call_operand.hbm [shape: s8[2,1,2,128], index: 2, kind: input, shape index: {}]
  %s3 = inlined_call_operand.vmem [shape: s8[2,1,2,128], index: 3, kind: input, shape index: {}]
  %s4 = inlined_call_operand.vmem [shape: f32[2,1,2,128], index: 4, kind: input, shape index: {}]
  %s5 = inlined_call_operand.hbm [shape: f32[2,1,2,128], index: 5, kind: output, shape index: {}]
  %s6 = sld [smem:[#allocation0]]
  $region69: #{tpu_custom_call.1} parent=0
    _
  %s8 = ssub.s32 1, %s6
  %s9 = scalar_select 0, %s8, %s6
  $region1: #{tpu_custom_call.1} parent=0
    #allocation3 [shape = 'u8[8192]{0}', space=vmem, size = 0x2000, scoped, tag = 'input window, operand 0']
    #allocation4 [shape = 's32[2]{0}', space=sflag, size = 0x8, scoped, tag = 'scoped memory for tpu_custom_call.1']
    #allocation5 [shape = 's32[2]{0}', space=sflag, size = 0x8, scoped, tag = 'scoped memory for tpu_custom_call.1']
    #allocation6 [shape = 'u8[1024]{0}', space=vmem, size = 0x400, scoped, tag = 'input window, operand 2']
    #allocation7 [shape = 's32[2]{0}', space=sflag, size = 0x8, scoped, tag = 'scoped memory for tpu_custom_call.1']
    #allocation8 [shape = 'u8[2048]{0}', space=vmem, size = 0x800, scoped, tag = 'output window, operand 0']
    %10 = vsyncpa [#allocation4], 0
    %s11 = scalar_lea.sflag [#allocation4], 1
    %12 = vsyncpa %s11, 0
    %13 = vsyncpa [#allocation7], 0
    %s14 = scalar_lea.sflag [#allocation7], 1
    %15 = vsyncpa %s14, 0
    %16 = vsyncpa [#allocation5], 0
    %s17 = scalar_lea.sflag [#allocation5], 1
    %18 = vsyncpa %s17, 0
    loop: start=0, step=1, limit=4
    $region2: #{tpu_custom_call.1} parent=1 // loop_pre_header
      _
    $region3: #{tpu_custom_call.1} parent=1 // loop_header
      %s20 = sphi 0, %s24
      %p21 = scmp.ge.s32.totalorder %s20, 4
      %s27 = sphi 0, %s46
      %s28 = sphi 0, %s42
      %s29 = sphi 0, %s38
      %s30 = sphi 0, %s27
      %s31 = sphi 0, %s28
      %s32 = sphi 0, %s29
      %s33 = sphi 0, %s30
      %s34 = sphi 0, %s31
      %s35 = sphi 0, %s32
      %s53 = sphi 0, %s55
      %s56 = sphi 0, %s53
      %s57 = sphi 0, %s56
      %s73 = sphi 0, %s57
      %s83 = sphi 0, %s85
      %s86 = sphi 0, %s83
      %s87 = sphi 0, %s86
      %s103 = sphi 0, %s87
      %s113 = sphi 0, %s115
      %s116 = sphi 0, %s113
      %s117 = sphi 0, %s116
      %s133 = sphi 0, %s117
      %s143 = sphi 0, %s145
      %s146 = sphi 0, %s143
      %s147 = sphi 0, %s146
      %s163 = sphi 0, %s147
      %s173 = sphi 0, %s175
      %s176 = sphi 0, %s173
      %s177 = sphi 0, %s176
      %s193 = sphi 0, %s177
      %s201 = sphi 0, %s203
      %s204 = sphi 0, %s201
      %s205 = sphi 0, %s204
      %s221 = sphi 0, %s205
    $region4: #{tpu_custom_call.1} parent=1 // loop_header_branch
      %23 = sbr.rel (%p21) target = $region8
    $region5: #{tpu_custom_call.1} parent=1 // loop_body
      %s25 = ssub.s32 %s20, 1
      %s26 = ssub.s32 %s20, 2
      %s36 = sadd.s32 1, %s29
      %p37 = scmp.ge.s32.totalorder %s36, 1
      %s38 = scalar_select %p37, 0, %s36
      %s39 = sadd.s32 1, %s28
      %s40 = scalar_select %p37, %s39, %s28
      %p41 = scmp.ge.s32.totalorder %s40, 1
      %s42 = scalar_select %p41, 0, %s40
      %s43 = sadd.s32 1, %s27
      %s44 = scalar_select %p41, %s43, %s27
      %p45 = scmp.ge.s32.totalorder %s44, 2
      %s46 = scalar_select %p45, 0, %s44
      %s47 = ssub.s32 %s27, %s46
      %s48 = ssub.s32 %s28, %s42
      %s49 = sor.u32 %s47, %s48
      %s50 = ssub.s32 %s29, %s38
      %s51 = sor.u32 %s49, %s50
      %p52 = scmp.eq.s32.totalorder %s51, 0
      %s54 = sadd.s32 %s53, 1
      %s55 = scalar_select %p52, %s53, %s54
      %p58 = pneg %p52
      %p59 = scmp.eq.s32.totalorder %s20, 1
      %p60 = por %p58, %p59
      %p61 = scmp.ne.s32.totalorder %s53, %s56
      %p62 = scmp.eq.s32.totalorder %s20, 0
      %p63 = por %p61, %p62
      %p64 = scmp.ne.s32.totalorder %s53, %s56
      %p65 = scmp.eq.s32.totalorder %s25, 1
      %p66 = por %p64, %p65
      %p67 = scmp.ne.s32.totalorder %s56, %s57
      %p68 = scmp.eq.s32.totalorder %s25, 0
      %p69 = por %p67, %p68
      %p70 = scmp.ne.s32.totalorder %s56, %s57
      %p71 = scmp.eq.s32.totalorder %s26, 1
      %p72 = por %p70, %p71
      %p74 = scmp.ne.s32.totalorder %s57, %s73
      %p75 = scmp.eq.s32.totalorder %s26, 0
      %p76 = por %p74, %p75
      %s77 = ssub.s32 %s27, %s46
      %s78 = ssub.s32 %s28, %s42
      %s79 = sor.u32 %s77, %s78
      %s80 = ssub.s32 %s29, %s38
      %s81 = sor.u32 %s79, %s80
      %p82 = scmp.eq.s32.totalorder %s81, 0
      %s84 = sadd.s32 %s83, 1
      %s85 = scalar_select %p82, %s83, %s84
      %p88 = pneg %p82
      %p89 = scmp.eq.s32.totalorder %s20, 1
      %p90 = por %p88, %p89
      %p91 = scmp.ne.s32.totalorder %s83, %s86
      %p92 = scmp.eq.s32.totalorder %s20, 0
      %p93 = por %p91, %p92
      %p94 = scmp.ne.s32.totalorder %s83, %s86
      %p95 = scmp.eq.s32.totalorder %s25, 1
      %p96 = por %p94, %p95
      %p97 = scmp.ne.s32.totalorder %s86, %s87
      %p98 = scmp.eq.s32.totalorder %s25, 0
      %p99 = por %p97, %p98
      %p100 = scmp.ne.s32.totalorder %s86, %s87
      %p101 = scmp.eq.s32.totalorder %s26, 1
      %p102 = por %p100, %p101
      %p104 = scmp.ne.s32.totalorder %s87, %s103
      %p105 = scmp.eq.s32.totalorder %s26, 0
      %p106 = por %p104, %p105
      %s107 = ssub.s32 %s27, %s46
      %s108 = ssub.s32 %s28, %s42
      %s109 = sor.u32 %s107, %s108
      %s110 = ssub.s32 %s29, %s38
      %s111 = sor.u32 %s109, %s110
      %p112 = scmp.eq.s32.totalorder %s111, 0
      %s114 = sadd.s32 %s113, 1
      %s115 = scalar_select %p112, %s113, %s114
      %p118 = pneg %p112
      %p119 = scmp.eq.s32.totalorder %s20, 1
      %p120 = por %p118, %p119
      %p121 = scmp.ne.s32.totalorder %s113, %s116
      %p122 = scmp.eq.s32.totalorder %s20, 0
      %p123 = por %p121, %p122
      %p124 = scmp.ne.s32.totalorder %s113, %s116
      %p125 = scmp.eq.s32.totalorder %s25, 1
      %p126 = por %p124, %p125
      %p127 = scmp.ne.s32.totalorder %s116, %s117
      %p128 = scmp.eq.s32.totalorder %s25, 0
      %p129 = por %p127, %p128
      %p130 = scmp.ne.s32.totalorder %s116, %s117
      %p131 = scmp.eq.s32.totalorder %s26, 1
      %p132 = por %p130, %p131
      %p134 = scmp.ne.s32.totalorder %s117, %s133
      %p135 = scmp.eq.s32.totalorder %s26, 0
      %p136 = por %p134, %p135
      %s137 = ssub.s32 %s27, %s46
      %s138 = ssub.s32 %s28, %s42
      %s139 = sor.u32 %s137, %s138
      %s140 = ssub.s32 %s29, %s38
      %s141 = sor.u32 %s139, %s140
      %p142 = scmp.eq.s32.totalorder %s141, 0
      %s144 = sadd.s32 %s143, 1
      %s145 = scalar_select %p142, %s143, %s144
      %p148 = pneg %p142
      %p149 = scmp.eq.s32.totalorder %s20, 1
      %p150 = por %p148, %p149
      %p151 = scmp.ne.s32.totalorder %s143, %s146
      %p152 = scmp.eq.s32.totalorder %s20, 0
      %p153 = por %p151, %p152
      %p154 = scmp.ne.s32.totalorder %s143, %s146
      %p155 = scmp.eq.s32.totalorder %s25, 1
      %p156 = por %p154, %p155
      %p157 = scmp.ne.s32.totalorder %s146, %s147
      %p158 = scmp.eq.s32.totalorder %s25, 0
      %p159 = por %p157, %p158
      %p160 = scmp.ne.s32.totalorder %s146, %s147
      %p161 = scmp.eq.s32.totalorder %s26, 1
      %p162 = por %p160, %p161
      %p164 = scmp.ne.s32.totalorder %s147, %s163
      %p165 = scmp.eq.s32.totalorder %s26, 0
      %p166 = por %p164, %p165
      %s167 = ssub.s32 %s27, %s46
      %s168 = ssub.s32 %s28, %s42
      %s169 = sor.u32 %s167, %s168
      %s170 = ssub.s32 %s29, %s38
      %s171 = sor.u32 %s169, %s170
      %p172 = scmp.eq.s32.totalorder %s171, 0
      %s174 = sadd.s32 %s173, 1
      %s175 = scalar_select %p172, %s173, %s174
      %p178 = pneg %p172
      %p179 = scmp.eq.s32.totalorder %s20, 1
      %p180 = por %p178, %p179
      %p181 = scmp.ne.s32.totalorder %s173, %s176
      %p182 = scmp.eq.s32.totalorder %s20, 0
      %p183 = por %p181, %p182
      %p184 = scmp.ne.s32.totalorder %s173, %s176
      %p185 = scmp.eq.s32.totalorder %s25, 1
      %p186 = por %p184, %p185
      %p187 = scmp.ne.s32.totalorder %s176, %s177
      %p188 = scmp.eq.s32.totalorder %s25, 0
      %p189 = por %p187, %p188
      %p190 = scmp.ne.s32.totalorder %s176, %s177
      %p191 = scmp.eq.s32.totalorder %s26, 1
      %p192 = por %p190, %p191
      %p194 = scmp.ne.s32.totalorder %s177, %s193
      %p195 = scmp.eq.s32.totalorder %s26, 0
      %p196 = por %p194, %p195
      %s197 = ssub.s32 %s27, %s46
      %s198 = ssub.s32 %s28, %s42
      %s199 = sor.u32 %s197, %s198
      %p200 = scmp.eq.s32.totalorder %s199, 0
      %s202 = sadd.s32 %s201, 1
      %s203 = scalar_select %p200, %s201, %s202
      %p206 = pneg %p200
      %p207 = scmp.eq.s32.totalorder %s20, 1
      %p208 = por %p206, %p207
      %p209 = scmp.ne.s32.totalorder %s201, %s204
      %p210 = scmp.eq.s32.totalorder %s20, 0
      %p211 = por %p209, %p210
      %p212 = scmp.ne.s32.totalorder %s201, %s204
      %p213 = scmp.eq.s32.totalorder %s25, 1
      %p214 = por %p212, %p213
      %p215 = scmp.ne.s32.totalorder %s204, %s205
      %p216 = scmp.eq.s32.totalorder %s25, 0
      %p217 = por %p215, %p216
      %p218 = scmp.ne.s32.totalorder %s204, %s205
      %p219 = scmp.eq.s32.totalorder %s26, 1
      %p220 = por %p218, %p219
      %p222 = scmp.ne.s32.totalorder %s205, %s221
      %p223 = scmp.eq.s32.totalorder %s26, 0
      %p224 = por %p222, %p223
      %p225 = scmp.le.s32.totalorder 1, %s20
      %p226 = scmp.lt.s32.totalorder %s20, 3
      %p227 = pnand %p225, %p226
      %p228 = pneg %p227
      // Predicated region
      $region9: #{tpu_custom_call.1} parent=5 // pred_check
        _
      $region10: #{tpu_custom_call.1} parent=5 // pred_check_branch
        %230 = sbr.rel (%p227) target = $region12
      $region11: #{tpu_custom_call.1} parent=5 // pred_region
        %s231 = ssub.s32 %s20, 1
      $region12: #{tpu_custom_call.1} parent=5 // pred_fallthru
        _
      %p232 = scmp.lt.s32.totalorder %s20, 2
      // Predicated region
      $region13: #{tpu_custom_call.1} parent=5 // pred_check
        %p233 = pneg %p232
      $region14: #{tpu_custom_call.1} parent=5 // pred_check_branch
        %235 = sbr.rel (%p233) target = $region16
      $region15: #{tpu_custom_call.1} parent=5 // pred_region
        // Predicated region
        $region17: #{tpu_custom_call.1} parent=15 // pred_check
          %p236 = pneg %p63
        $region18: #{tpu_custom_call.1} parent=15 // pred_check_branch
          %238 = sbr.rel (%p236) target = $region20
        $region19: #{tpu_custom_call.1} parent=15 // pred_region
          %s239 = sand.u32 %s53, 1
          %s240 = scalar_lea.sflag [#allocation4], %s239
          %s241 = sand.u32 %s53, 1
          %s242 = smul.addr %s241, 8
          %s243 = scalar_lea.vmem [#allocation3], %s242
          %s245 = ssub.s32 128, 128
          %246 = vsyncadd %s240, %s245
          %s247 = sadd.s32 %s29, %s28
          %s248 = smul.addr %s27, 4
          %s249 = sadd.s32 %s247, %s248
          %s250 = smul.addr %s249, 32
          %s251 = scalar_lea.hbm %s0, %s250
          %s252 = sshll.u32 %s243, 4
          %s253 = int_to_ptr.vmem [resolvable:$true] %s252
          %258 = dma.hbm_to_vmem [thread:$0]  %s251, 128, %s253, %s240, 32, 32, 2
        $region20: #{tpu_custom_call.1} parent=15 // pred_fallthru
          _
        // Predicated region
        $region21: #{tpu_custom_call.1} parent=15 // pred_check
          %p259 = pneg %p93
        $region22: #{tpu_custom_call.1} parent=15 // pred_check_branch
          %261 = sbr.rel (%p259) target = $region24
        $region23: #{tpu_custom_call.1} parent=15 // pred_region
          %p262 = scmp.lt.s32.totalorder %s27, 1
          %s263 = scalar_select %p262, %s27, 1
          %p264 = scmp.lt.s32.totalorder %s28, 0
          %s265 = scalar_select %p264, %s28, 0
          %p266 = scmp.lt.s32.totalorder %s29, 0
          %s267 = scalar_select %p266, %s29, 0
          %s268 = sadd.s32 %s267, %s265
          %s269 = sadd.s32 %s268, %s263
          %s270 = scalar_lea.vmem %s1, %s269
        $region24: #{tpu_custom_call.1} parent=15 // pred_fallthru
          _
        // Predicated region
        $region25: #{tpu_custom_call.1} parent=15 // pred_check
          %p271 = pneg %p123
        $region26: #{tpu_custom_call.1} parent=15 // pred_check_branch
          %273 = sbr.rel (%p271) target = $region28
        $region27: #{tpu_custom_call.1} parent=15 // pred_region
          %s274 = sand.u32 %s113, 1
          %s275 = scalar_lea.sflag [#allocation7], %s274
          %s276 = sand.u32 %s113, 1
          %s277 = scalar_lea.vmem [#allocation6], %s276
          %s279 = ssub.s32 16, 16
          %280 = vsyncadd %s275, %s279
          %s281 = sadd.s32 %s29, %s28
          %s282 = sadd.s32 %s281, %s27
          %s283 = smul.addr %s282, 16
          %s284 = scalar_lea.hbm %s2, %s283
          %s286 = sshll.u32 %s277, 4
          %s287 = int_to_ptr.vmem [resolvable:$true] %s286
          %289 = dma.hbm_to_vmem [thread:$0]  %s284, 16, %s287, %s275
        $region28: #{tpu_custom_call.1} parent=15 // pred_fallthru
          _
        // Predicated region
        $region29: #{tpu_custom_call.1} parent=15 // pred_check
          %p290 = pneg %p153
        $region30: #{tpu_custom_call.1} parent=15 // pred_check_branch
          %292 = sbr.rel (%p290) target = $region32
        $region31: #{tpu_custom_call.1} parent=15 // pred_region
          %p293 = scmp.lt.s32.totalorder %s27, 1
          %s294 = scalar_select %p293, %s27, 1
          %p295 = scmp.lt.s32.totalorder %s28, 0
          %s296 = scalar_select %p295, %s28, 0
          %p297 = scmp.lt.s32.totalorder %s29, 0
          %s298 = scalar_select %p297, %s29, 0
          %s299 = sadd.s32 %s298, %s296
          %s300 = sadd.s32 %s299, %s294
          %s301 = scalar_lea.vmem %s3, %s300
        $region32: #{tpu_custom_call.1} parent=15 // pred_fallthru
          _
        // Predicated region
        $region33: #{tpu_custom_call.1} parent=15 // pred_check
          %p302 = pneg %p183
        $region34: #{tpu_custom_call.1} parent=15 // pred_check_branch
          %304 = sbr.rel (%p302) target = $region36
        $region35: #{tpu_custom_call.1} parent=15 // pred_region
          %p305 = scmp.lt.s32.totalorder %s27, 1
          %s306 = scalar_select %p305, %s27, 1
          %p307 = scmp.lt.s32.totalorder %s28, 0
          %s308 = scalar_select %p307, %s28, 0
          %p309 = scmp.lt.s32.totalorder %s29, 0
          %s310 = scalar_select %p309, %s29, 0
          %s311 = sadd.s32 %s310, %s308
          %s312 = sadd.s32 %s311, %s306
          %s313 = smul.addr %s312, 2
          %s314 = scalar_lea.vmem %s4, %s313
        $region36: #{tpu_custom_call.1} parent=15 // pred_fallthru
          _
      $region16: #{tpu_custom_call.1} parent=5 // pred_fallthru
        _
      %p315 = scmp.le.s32.totalorder 1, %s20
      %p316 = scmp.lt.s32.totalorder %s20, 3
      %p317 = pnand %p315, %p316
      %p318 = pneg %p317
      // Predicated region
      $region37: #{tpu_custom_call.1} parent=5 // pred_check
        _
      $region38: #{tpu_custom_call.1} parent=5 // pred_check_branch
        %320 = sbr.rel (%p317) target = $region40
      $region39: #{tpu_custom_call.1} parent=5 // pred_region
        %s321 = ssub.s32 %s20, 1
        %s322 = sand.u32 %s56, 1
        %s323 = scalar_lea.sflag [#allocation4], %s322
        %s324 = sand.u32 %s56, 1
        %s325 = smul.addr %s324, 8
        %s326 = scalar_lea.vmem [#allocation3], %s325
        // Predicated region
        $region41: #{tpu_custom_call.1} parent=39 // pred_check
          %p327 = pneg %p69
        $region42: #{tpu_custom_call.1} parent=39 // pred_check_branch
          %329 = sbr.rel (%p327) target = $region44
        $region43: #{tpu_custom_call.1} parent=39 // pred_region
          %330 = dma.done %s323, 128
        $region44: #{tpu_custom_call.1} parent=39 // pred_fallthru
          _
        %s331 = sand.u32 %s116, 1
        %s332 = scalar_lea.sflag [#allocation7], %s331
        %s333 = sand.u32 %s116, 1
        %s334 = scalar_lea.vmem [#allocation6], %s333
        // Predicated region
        $region45: #{tpu_custom_call.1} parent=39 // pred_check
          %p335 = pneg %p129
        $region46: #{tpu_custom_call.1} parent=39 // pred_check_branch
          %337 = sbr.rel (%p335) target = $region48
        $region47: #{tpu_custom_call.1} parent=39 // pred_region
          %338 = dma.done %s332, 16
        $region48: #{tpu_custom_call.1} parent=39 // pred_fallthru
          _
        %s339 = sand.u32 %s56, 1
        %s340 = scalar_lea.sflag [#allocation4], %s339
        %s341 = sand.u32 %s56, 1
        %s342 = smul.addr %s341, 8
        %s343 = scalar_lea.vmem [#allocation3], %s342
        %p344 = pneg %p69
        %p345 = pneg %p66
        %p346 = scmp.lt.s32.totalorder %s30, 1
        %s347 = scalar_select %p346, %s30, 1
        %p348 = scmp.lt.s32.totalorder %s31, 0
        %s349 = scalar_select %p348, %s31, 0
        %p350 = scmp.lt.s32.totalorder %s32, 0
        %s351 = scalar_select %p350, %s32, 0
        %s352 = sadd.s32 %s351, %s349
        %s353 = sadd.s32 %s352, %s347
        %s354 = scalar_lea.vmem %s1, %s353
        %p355 = pneg %p99
        %p356 = pneg %p96
        %s357 = sand.u32 %s116, 1
        %s358 = scalar_lea.sflag [#allocation7], %s357
        %s359 = sand.u32 %s116, 1
        %s360 = scalar_lea.vmem [#allocation6], %s359
        %p361 = pneg %p129
        %p362 = pneg %p126
        %p363 = scmp.lt.s32.totalorder %s30, 1
        %s364 = scalar_select %p363, %s30, 1
        %p365 = scmp.lt.s32.totalorder %s31, 0
        %s366 = scalar_select %p365, %s31, 0
        %p367 = scmp.lt.s32.totalorder %s32, 0
        %s368 = scalar_select %p367, %s32, 0
        %s369 = sadd.s32 %s368, %s366
        %s370 = sadd.s32 %s369, %s364
        %s371 = scalar_lea.vmem %s3, %s370
        %p372 = pneg %p159
        %p373 = pneg %p156
        %p374 = scmp.lt.s32.totalorder %s30, 1
        %s375 = scalar_select %p374, %s30, 1
        %p376 = scmp.lt.s32.totalorder %s31, 0
        %s377 = scalar_select %p376, %s31, 0
        %p378 = scmp.lt.s32.totalorder %s32, 0
        %s379 = scalar_select %p378, %s32, 0
        %s380 = sadd.s32 %s379, %s377
        %s381 = sadd.s32 %s380, %s375
        %s382 = smul.addr %s381, 2
        %s383 = scalar_lea.vmem %s4, %s382
        %p384 = pneg %p189
        %p385 = pneg %p186
        %p386 = pneg %p217
        %p387 = pneg %p214
        %s388 = sand.u32 %s204, 1
        %s389 = scalar_lea.sflag [#allocation5], %s388
        %s390 = sand.u32 %s204, 1
        %s391 = smul.addr %s390, 2
        %s392 = scalar_lea.vmem [#allocation8], %s391
        %p393 = scmp.lt.s32.totalorder %s30, 1
        %s394 = scalar_select %p393, %s30, 1
        %p395 = scmp.lt.s32.totalorder %s31, 0
        %s396 = scalar_select %p395, %s31, 0
        %p397 = scmp.lt.s32.totalorder %s32, 0
        %s398 = scalar_select %p397, %s32, 0
        %s399 = sadd.s32 %s398, %s396
        %s400 = sadd.s32 %s399, %s394
        %s401 = scalar_lea.vmem %s1, %s400
        %p402 = scmp.lt.s32.totalorder %s30, 1
        %s403 = scalar_select %p402, %s30, 1
        %p404 = scmp.lt.s32.totalorder %s31, 0
        %s405 = scalar_select %p404, %s31, 0
        %p406 = scmp.lt.s32.totalorder %s32, 0
        %s407 = scalar_select %p406, %s32, 0
        %s408 = sadd.s32 %s407, %s405
        %s409 = sadd.s32 %s408, %s403
        %s410 = scalar_lea.vmem %s3, %s409
        %p411 = scmp.lt.s32.totalorder %s30, 1
        %s412 = scalar_select %p411, %s30, 1
        %p413 = scmp.lt.s32.totalorder %s31, 0
        %s414 = scalar_select %p413, %s31, 0
        %p415 = scmp.lt.s32.totalorder %s32, 0
        %s416 = scalar_select %p415, %s32, 0
        %s417 = sadd.s32 %s416, %s414
        %s418 = sadd.s32 %s417, %s412
        %s419 = smul.addr %s418, 2
        %s420 = scalar_lea.vmem %s4, %s419
        %p421 = scmp.eq.s32.totalorder %s32, 0
        // Predicated region
        $region49: #{tpu_custom_call.1} parent=39 // pred_check
          %p422 = pneg %p421
        $region50: #{tpu_custom_call.1} parent=39 // pred_check_branch
          %424 = sbr.rel (%p422) target = $region52
        $region51: #{tpu_custom_call.1} parent=39 // pred_region
          %425 = vst [vmem:[#allocation2] sm:$0x3] 0.0
        $region52: #{tpu_custom_call.1} parent=39 // pred_fallthru
          _
        %v426 = vld [vmem:[%s401] sm:$0x1]
        %v427 = vunpack.c.0.s8 %v426
        %v428 = vld [vmem:[%s334] sm:$0x1]
        %v429 = vunpack.c.0.s8 %v428
        %v430 = vld [vmem:[%s410] sm:$0x1]
        %v431 = vunpack.c.0.s8 %v430
        %v432 = vld [vmem:[%s420] sm:$0x3]
        %vm433 = vcmp.eq.s32.totalorder %v431, 0
        %v434 = vsel %vm433, %v429, %v427
        %v435 = vld [vmem:[%s326] sm:$0x3]
        %s436 = scalar_lea.vmem %s326, 2 [#allocation3]
        %v437 = vld [vmem:[%s436] sm:$0x3]
        %s438 = scalar_lea.vmem %s326, 4 [#allocation3]
        %v439 = vld [vmem:[%s438] sm:$0x3]
        %s440 = scalar_lea.vmem %s326, 6 [#allocation3]
        %v441 = vld [vmem:[%s440] sm:$0x3]
        %v442 = vmax.f32 %v435, %v437
        %v443 = vmax.f32 %v442, %v439
        %v444 = vmax.f32 %v443, %v441
        %v445 = vsub.f32 %v435, %v444
        %v446 = vmul.f32 %v445, 1.442695
        %v447 = vpow.pop %v446
        %vm448 = vcmp.eq.s32.totalorder %v434, 0
        %v449 = vsel %vm448, %v435, 0.0
        %v450 = vsub.f32 %v437, %v444
        %v451 = vmul.f32 %v450, 1.442695
        %v452 = vpow.pop %v451
        %v453 = vadd.f32 %v447, %v452
        %vm454 = vcmp.eq.s32.totalorder %v434, 1
        %v455 = vsel %vm454, %v437, 0.0
        %v456 = vadd.f32 %v449, %v455
        %v457 = vsub.f32 %v439, %v444
        %v458 = vmul.f32 %v457, 1.442695
        %v459 = vpow.pop %v458
        %v460 = vadd.f32 %v453, %v459
        %vm461 = vcmp.eq.s32.totalorder %v434, 2
        %v462 = vsel %vm461, %v439, 0.0
        %v463 = vadd.f32 %v456, %v462
        %v464 = vsub.f32 %v441, %v444
        %v465 = vmul.f32 %v464, 1.442695
        %v466 = vpow.pop %v465
        %v467 = vadd.f32 %v460, %v466
        %vm468 = vcmp.eq.s32.totalorder %v434, 3
        %v469 = vsel %vm468, %v441, 0.0
        %v470 = vadd.f32 %v463, %v469
        %v471 = vlog2.pop %v467
        %v472 = vmul.f32 %v471, 0.6931472
        %v473 = vadd.f32 %v472, %v444
        %v474 = vsub.f32 %v473, %v470
        %vm475 = vcmp.eq.s32.totalorder %v431, 1
        %v476 = vsel %vm475, 0.0, %v432
        %v477 = vsub.f32 0.0, %v476
        %v478 = vmul.f32 %v477, 1.442695
        %v479 = vpow.pop %v478
        %v480 = vmul.f32 %v474, %v479
        %v481 = vld [vmem:[#allocation2] sm:$0x3]
        %v482 = vadd.f32 %v481, %v480
        %483 = vst [vmem:[#allocation2] sm:$0x3] %v482
        // Predicated region
        $region53: #{tpu_custom_call.1} parent=39 // pred_check
          %p484 = pneg %p421
        $region54: #{tpu_custom_call.1} parent=39 // pred_check_branch
          %486 = sbr.rel (%p484) target = $region56
        $region55: #{tpu_custom_call.1} parent=39 // pred_region
          %v487 = vld [vmem:[#allocation2] sm:$0x3]
          %488 = vst [vmem:[%s392] sm:$0x3] %v487
        $region56: #{tpu_custom_call.1} parent=39 // pred_fallthru
          _
        %s489 = sand.u32 %s204, 1
        %s490 = scalar_lea.sflag [#allocation5], %s489
        %s491 = sand.u32 %s204, 1
        %s492 = smul.addr %s491, 2
        %s493 = scalar_lea.vmem [#allocation8], %s492
        // Predicated region
        $region57: #{tpu_custom_call.1} parent=39 // pred_check
          %p494 = pneg %p214
        $region58: #{tpu_custom_call.1} parent=39 // pred_check_branch
          %496 = sbr.rel (%p494) target = $region60
        $region59: #{tpu_custom_call.1} parent=39 // pred_region
          %s498 = ssub.s32 32, 32
          %499 = vsyncadd %s490, %s498
          %s500 = sadd.s32 %s31, %s30
          %s501 = smul.addr %s500, 32
          %s502 = scalar_lea.hbm %s5, %s501
          %s504 = sshll.u32 %s493, 4
          %s505 = int_to_ptr.vmem [resolvable:$true] %s504
          %507 = dma.vmem_to_hbm [thread:$0]  %s505, 32, %s502, %s490
        $region60: #{tpu_custom_call.1} parent=39 // pred_fallthru
          _
      $region40: #{tpu_custom_call.1} parent=5 // pred_fallthru
        _
      %p508 = scmp.le.s32.totalorder 2, %s20
      // Predicated region
      $region61: #{tpu_custom_call.1} parent=5 // pred_check
        %p509 = pneg %p508
      $region62: #{tpu_custom_call.1} parent=5 // pred_check_branch
        %511 = sbr.rel (%p509) target = $region64
      $region63: #{tpu_custom_call.1} parent=5 // pred_region
        %s512 = ssub.s32 %s20, 2
        // Predicated region
        $region65: #{tpu_custom_call.1} parent=63 // pred_check
          %p513 = pneg %p220
        $region66: #{tpu_custom_call.1} parent=63 // pred_check_branch
          %515 = sbr.rel (%p513) target = $region68
        $region67: #{tpu_custom_call.1} parent=63 // pred_region
          %s516 = sand.u32 %s205, 1
          %s517 = scalar_lea.sflag [#allocation5], %s516
          %s518 = sand.u32 %s205, 1
          %s519 = smul.addr %s518, 2
          %s520 = scalar_lea.vmem [#allocation8], %s519
          %521 = dma.done %s517, 32
        $region68: #{tpu_custom_call.1} parent=63 // pred_fallthru
          _
      $region64: #{tpu_custom_call.1} parent=5 // pred_fallthru
        _
    $region6: #{tpu_custom_call.1} parent=1 // loop_footer
      %s24 = sadd.s32 1, %s20
    $region7: #{tpu_custom_call.1} parent=1 // loop_footer_branch
      %19 = sbr.rel target = $region3
    $region8: #{tpu_custom_call.1} parent=1 // loop_exit
      _
    %522 = vsyncpa [#allocation4], 1
    %s523 = scalar_lea.sflag [#allocation4], 1
    %524 = vsyncpa %s523, 1
    %525 = vsyncpa [#allocation7], 1
    %s526 = scalar_lea.sflag [#allocation7], 1
    %527 = vsyncpa %s526, 1
    %528 = vsyncpa [#allocation5], 1
    %s529 = scalar_lea.sflag [#allocation5], 1
    %530 = vsyncpa %s529, 1

</llo_original>
